<compile_context>
chip_gen: v7x
topology: tpu7x:2x2x1
jax: 0.10.0
libtpu: 0.0.40
codegen_flags: <defaults>
</compile_context>

<pallas_src>
import jax
import jax.numpy as jnp
from jax.experimental import pallas as pl
from jax.experimental.pallas import tpu as pltpu


def _learner_kernel(xpT_ref, wcat_ref, vec_ref, eps_ref,
                    z_ref, mean_ref, logvar_ref):
    """One grid step == BB batch samples.

    xpT_ref : (BB, C*4, P)  im2col'ed input, rows=(ci,kh,kw), cols=(ho,wo)
    wcat_ref: (2C, C*4)     [mean-branch weight ; logvar-branch weight]
    vec_ref : (2C, 3)       columns = [conv bias, IN gamma, IN beta]
    eps_ref : (BB, C, P)    reparameterization noise (flattened NCHW)
    outputs : (BB, C, P)    z, mean, logvar (flattened NCHW)
    """
    BB, _, P = xpT_ref.shape
    C2 = wcat_ref.shape[0]
    C = C2 // 2

    w = wcat_ref[...]            # (2C, C4)
    bias = vec_ref[:, 0:1]       # (2C, 1)
    gamma = vec_ref[:, 1:2]      # (2C, 1)
    beta = vec_ref[:, 2:3]       # (2C, 1)
    inv_p = 1.0 / float(P)

    def body(si, carry):
        xp = xpT_ref[si]         # (C4, P)

        # Conv2d(k=2, s=2) for BOTH branches as a single matmul (f32 accum).
        h = jnp.dot(w, xp, preferred_element_type=jnp.float32) + bias  # (2C,P)

        # InstanceNorm2d: two-pass stats (biased var, eps=1e-5), folded affine.
        mu = jnp.sum(h, axis=1, keepdims=True) * inv_p          # (2C, 1)
        d = h - mu
        var = jnp.sum(d * d, axis=1, keepdims=True) * inv_p     # (2C, 1)
        scale = gamma * jax.lax.rsqrt(var + 1e-5)
        hn = d * scale + beta

        # LeakyReLU(0.2)
        hn = jnp.where(hn > 0, hn, 0.2 * hn)

        m = hn[:C]               # (C, P)  mean branch
        lv = hn[C:]              # (C, P)  logvar branch

        mean_ref[si] = m
        logvar_ref[si] = lv
        z_ref[si] = m + lv * eps_ref[si]   # z = mean + log_var * eps
        return carry

    # Unroll only when the per-sample (2C, P) tile is small enough that
    # multiple live iterations will not cause vreg/VMEM spills.
    unroll = bool(BB <= 8 and (C2 * P * 4) <= (128 * 1024))
    jax.lax.fori_loop(0, BB, body, 0, unroll=unroll)


def _vmem_capacity_bytes():
    try:
        return int(pltpu.get_tpu_info().vmem_capacity_bytes)
    except Exception:
        return 64 * 1024 * 1024  # conservative default (v7x per-TC VMEM)


def _pick_tiling(B, C, P, x_itemsize):
    """Choose samples-per-grid-step (BB) and an explicit VMEM limit.

    Per grid step the pipelined blocks cost roughly
      2 * (xpT + eps + 3 outputs)   (double-buffered)
    plus loop-invariant params and h/hn temporaries.  BB is the largest batch
    divisor that fits ~70% of the chip's VMEM, preferring >=2 grid steps so
    dual-TC chips (v7x) / megacore stay busy.
    """
    C4, C2 = 4 * C, 2 * C
    cap = _vmem_capacity_bytes()
    budget = int(0.70 * cap)

    def step_bytes(bb):
        xp = bb * C4 * P * x_itemsize
        eps = bb * C * P * 4
        outs = 3 * bb * C * P * 4
        dbuf = 2 * (xp + eps + outs)                      # double-buffered
        par = 2 * (C2 * C4 * x_itemsize + C2 * 3 * 4)     # weights + vecs
        temps = 6 * C2 * P * 4                            # h / d / hn headroom
        return dbuf + par + temps

    divisors = [d for d in range(1, B + 1) if B % d == 0]
    bb = None
    for cand in sorted(divisors, reverse=True):           # prefer >= 2 steps
        if (B // cand) >= 2 and step_bytes(cand) <= budget:
            bb = cand
            break
    if bb is None:
        for cand in sorted(divisors, reverse=True):        # single step is OK
            if step_bytes(cand) <= budget:
                bb = cand
                break
    if bb is None:
        # TODO(synk): a single sample exceeds the VMEM budget — add a
        # channel-parallel grid axis (IN stats are per-channel, block-local).
        bb = 1

    vmem_limit = int(min(0.85 * cap, step_bytes(bb) + (8 << 20)))
    vmem_limit = max(vmem_limit, 16 << 20)
    return bb, vmem_limit


def learner_forward(x, params, eps_noise, matmul_dtype=jnp.bfloat16):
    """x: (B, C, H, W) float32 NCHW.  Returns (z, mean, logvar), each
    (B, C, H//2, W//2) NCHW float32.

    matmul_dtype: dtype of the xpT stream / conv weights (default bf16 —
    MXU-native, halves the largest HBM read).  Set jnp.float32 for a
    bit-faithful comparison with the f32 PyTorch module.
    """
    B, C, H, W = x.shape
    Ho, Wo = H // 2, W // 2          # PyTorch Conv2d(k=2, s=2) floors
    P = Ho * Wo
    C4 = C * 4
    C2 = 2 * C

    # Crop (no-op for even H/W) so the im2col reshape is exact.
    x = x[:, :, :2 * Ho, :2 * Wo]

    # im2col, transposed layout: (B, C4, P), rows=(ci,kh,kw), cols=(ho,wo).
    # TODO(synk): replace this wrapper-side transpose with an in-kernel 2x2
    # tap gather (strided pl.ds reads) to drop the extra full-tensor HBM
    # round trip; allow_input_fusion below already lets XLA fuse this
    # cast+transpose into the Pallas input pipeline when supported.
    xpT = (x.reshape(B, C, Ho, 2, Wo, 2)
             .transpose(0, 1, 3, 5, 2, 4)
             .reshape(B, C4, P)).astype(matmul_dtype)

    # Conv weights (C_out, C_in, 2, 2) -> (C, C4), concat branches -> (2C, C4).
    wcat = jnp.concatenate(
        [params["wm"].reshape(C, C4), params["wl"].reshape(C, C4)],
        axis=0).astype(matmul_dtype)

    # Pack the 6 per-channel vectors into one (2C, 3) f32 array.
    def col(a, b):
        return jnp.concatenate([a, b], axis=0).reshape(C2, 1)
    vecs = jnp.concatenate(
        [col(params["bm"], params["bl"]),
         col(params["gm"], params["gl"]),
         col(params["bem"], params["bel"])], axis=1).astype(jnp.float32)

    # Noise stays in NCHW; (B, C, Ho, Wo) -> (B, C, P) is a free reshape.
    eps_p = eps_noise.reshape(B, C, P).astype(jnp.float32)

    x_itemsize = jnp.dtype(matmul_dtype).itemsize
    BB, vmem_limit = _pick_tiling(B, C, P, x_itemsize)
    grid = (B // BB,)

    # TODO(synk): when P is not a multiple of 128 (tiny feature maps), a
    # flattened (BB, C*P) out_spec would make stores fully lane-dense.
    io_spec = pl.BlockSpec((BB, C, P), lambda i: (i, 0, 0))

    cost = pl.CostEstimate(
        flops=int(2 * B * C2 * C4 * P + 12 * B * C2 * P),
        transcendentals=int(B * C2),
        bytes_accessed=int(B * C4 * P * x_itemsize      # xpT
                           + 4 * B * C * P               # eps
                           + 12 * B * C * P              # 3 f32 outputs
                           + C2 * C4 * x_itemsize + C2 * 3 * 4))

    z, mean, logvar = pl.pallas_call(
        _learner_kernel,
        out_shape=[jax.ShapeDtypeStruct((B, C, P), jnp.float32)] * 3,
        grid_spec=pltpu.PrefetchScalarGridSpec(
            num_scalar_prefetch=0,
            grid=grid,
            in_specs=[
                pl.BlockSpec((BB, C4, P), lambda i: (i, 0, 0)),  # xpT
                pl.BlockSpec((C2, C4), lambda i: (0, 0)),        # wcat
                pl.BlockSpec((C2, 3), lambda i: (0, 0)),         # packed vecs
                io_spec,                                         # eps
            ],
            out_specs=[io_spec, io_spec, io_spec],
        ),
        compiler_params=pltpu.CompilerParams(
            dimension_semantics=("parallel",),
            vmem_limit_bytes=vmem_limit,
            allow_input_fusion=[True, False, False, False]),
        cost_estimate=cost,
    )(xpT, wcat, vecs, eps_p)

    # Flattened-NCHW -> NCHW: pure reshape, no transpose / HBM shuffle.
    shp = (B, C, Ho, Wo)
    return z.reshape(shp), mean.reshape(shp), logvar.reshape(shp)


def init_params(C, key):
    """Deterministic init matching PyTorch shapes.

    Conv2d(C, C, 2, 2): weight (C, C, 2, 2), bias (C,) -- uniform(-k, k), k=1/sqrt(C*4)
    InstanceNorm2d(C, affine=True): weight ones(C), bias zeros(C)
    """
    k = 1.0 / jnp.sqrt(jnp.float32(C * 4))
    keys = jax.random.split(key, 4)
    return {
        "wm": jax.random.uniform(keys[0], (C, C, 2, 2), jnp.float32, -k, k),
        "bm": jax.random.uniform(keys[1], (C,), jnp.float32, -k, k),
        "gm": jnp.ones((C,), jnp.float32),
        "bem": jnp.zeros((C,), jnp.float32),
        "wl": jax.random.uniform(keys[2], (C, C, 2, 2), jnp.float32, -k, k),
        "bl": jax.random.uniform(keys[3], (C,), jnp.float32, -k, k),
        "gl": jnp.ones((C,), jnp.float32),
        "bel": jnp.zeros((C,), jnp.float32),
    }


def _reference(x, params, eps_noise):
    """Pure-JAX reference of the PyTorch module (for correctness check)."""
    def branch(w, b, g, be):
        y = jax.lax.conv_general_dilated(
            x, w, window_strides=(2, 2), padding="VALID",
            dimension_numbers=("NCHW", "OIHW", "NCHW"),
            precision=jax.lax.Precision.HIGHEST)
        y = y + b.reshape(1, -1, 1, 1)
        mu = jnp.mean(y, axis=(2, 3), keepdims=True)
        var = jnp.mean((y - mu) ** 2, axis=(2, 3), keepdims=True)
        y = (y - mu) * jax.lax.rsqrt(var + 1e-5)
        y = y * g.reshape(1, -1, 1, 1) + be.reshape(1, -1, 1, 1)
        return jnp.where(y > 0, y, 0.2 * y)

    m = branch(params["wm"], params["bm"], params["gm"], params["bem"])
    lv = branch(params["wl"], params["bl"], params["gl"], params["bel"])
    return m + lv * eps_noise, m, lv


if __name__ == "__main__":
    B, C, H, W = 2, 4, 16, 16
    root = jax.random.PRNGKey(0)
    kx, kp, ke = jax.random.split(root, 3)

    x = jax.random.normal(kx, (B, C, H, W), jnp.float32)
    params = init_params(C, kp)
    # reparameterization noise (torch.randn_like(mean)); deterministic here
    eps_noise = jax.random.normal(ke, (B, C, H // 2, W // 2), jnp.float32)

    shp = (B, C, H // 2, W // 2)

    # ---- f32 matmul path: tight comparison with the f32 reference ----------
    z, mean, logvar = learner_forward(x, params, eps_noise,
                                      matmul_dtype=jnp.float32)
    jax.block_until_ready((z, mean, logvar))

    assert z.shape == shp and mean.shape == shp and logvar.shape == shp
    assert bool(jnp.all(jnp.isfinite(z)))
    # z must equal mean + logvar * eps by construction
    assert bool(jnp.allclose(z, mean + logvar * eps_noise, atol=1e-5, rtol=1e-5))

    z_r, m_r, lv_r = _reference(x, params, eps_noise)
    assert bool(jnp.allclose(mean, m_r, atol=1e-3, rtol=1e-3))
    assert bool(jnp.allclose(logvar, lv_r, atol=1e-3, rtol=1e-3))
    assert bool(jnp.allclose(z, z_r, atol=2e-3, rtol=2e-3))

    # ---- default bf16 matmul path: compare with a bf16-quantized reference -
    z16, m16, lv16 = learner_forward(x, params, eps_noise)
    jax.block_until_ready((z16, m16, lv16))
    assert z16.shape == shp and bool(jnp.all(jnp.isfinite(z16)))

    xq = x.astype(jnp.bfloat16).astype(jnp.float32)
    pq = dict(params)
    pq["wm"] = params["wm"].astype(jnp.bfloat16).astype(jnp.float32)
    pq["wl"] = params["wl"].astype(jnp.bfloat16).astype(jnp.float32)
    zq_r, mq_r, lvq_r = _reference(xq, pq, eps_noise)
    assert bool(jnp.allclose(m16, mq_r, atol=5e-3, rtol=5e-3))
    assert bool(jnp.allclose(lv16, lvq_r, atol=5e-3, rtol=5e-3))
    assert bool(jnp.allclose(z16, zq_r, atol=1e-2, rtol=1e-2))

    print("KERNEL_OK")
</pallas_src>

<mosaic_0001>
module attributes {stable_mosaic.version = 11 : i64} {
  func.func @_learner_kernel(%arg0: i32, %arg1: memref<1x16x64xf32, #tpu.memory_space<vmem>>, %arg2: memref<8x16xf32, #tpu.memory_space<vmem>>, %arg3: memref<8x3xf32, #tpu.memory_space<vmem>>, %arg4: memref<1x4x64xf32, #tpu.memory_space<vmem>>, %arg5: memref<1x4x64xf32, #tpu.memory_space<vmem>>, %arg6: memref<1x4x64xf32, #tpu.memory_space<vmem>>, %arg7: memref<1x4x64xf32, #tpu.memory_space<vmem>>) attributes {dimension_semantics = [#tpu.dimension_semantics<parallel>], iteration_bounds = array<i64: 2>, scalar_prefetch = 0 : i64, scratch_operands = 0 : i64, tpu.core_type = #tpu.core_type<tc>, window_params = [{transform_indices = @transform_0, window_bounds = array<i64: 1, 16, 64>}, {pipeline_mode = #tpu.pipeline_mode<synchronous>, transform_indices = @transform_1, window_bounds = array<i64: 8, 16>}, {pipeline_mode = #tpu.pipeline_mode<synchronous>, transform_indices = @transform_2, window_bounds = array<i64: 8, 3>}, {transform_indices = @transform_3, window_bounds = array<i64: 1, 4, 64>}, {transform_indices = @transform_4, window_bounds = array<i64: 1, 4, 64>}, {transform_indices = @transform_5, window_bounds = array<i64: 1, 4, 64>}, {transform_indices = @transform_6, window_bounds = array<i64: 1, 4, 64>}]} {
    %c0 = arith.constant 0 : index
    %c0_0 = arith.constant 0 : index
    %0 = vector.load %arg2[%c0, %c0_0] : memref<8x16xf32, #tpu.memory_space<vmem>>, vector<8x16xf32>
    %c0_1 = arith.constant 0 : index
    %c0_2 = arith.constant 0 : index
    %1 = vector.load %arg3[%c0_1, %c0_2] : memref<8x3xf32, #tpu.memory_space<vmem>>, vector<8x1xf32>
    %c0_3 = arith.constant 0 : index
    %c1 = arith.constant 1 : index
    %2 = vector.load %arg3[%c0_3, %c1] : memref<8x3xf32, #tpu.memory_space<vmem>>, vector<8x1xf32>
    %c0_4 = arith.constant 0 : index
    %c2 = arith.constant 2 : index
    %3 = vector.load %arg3[%c0_4, %c2] : memref<8x3xf32, #tpu.memory_space<vmem>>, vector<8x1xf32>
    %c0_i32 = arith.constant 0 : i32
    %4 = arith.index_cast %c0_i32 : i32 to index
    %c0_5 = arith.constant 0 : index
    %c0_6 = arith.constant 0 : index
    %5 = vector.load %arg1[%4, %c0_5, %c0_6] : memref<1x16x64xf32, #tpu.memory_space<vmem>>, vector<1x16x64xf32>
    %6 = vector.shape_cast %5 : vector<1x16x64xf32> to vector<16x64xf32>
    %cst = arith.constant dense<0.000000e+00> : vector<8x64xf32>
    %7 = tpu.matmul %0, %6, %cst {dimension_numbers = #tpu.dot_dimension_numbers<[1], [0], [0], [1], [0, 0, 1, 1], [], []>} : vector<8x16xf32>, vector<16x64xf32>, vector<8x64xf32> -> vector<8x64xf32>
    %8 = vector.broadcast %1 : vector<8x1xf32> to vector<8x64xf32>
    %9 = arith.addf %7, %8 : vector<8x64xf32>
    %cst_7 = arith.constant dense<0.000000e+00> : vector<8xf32>
    %10 = vector.multi_reduction <add>, %9, %cst_7 [1] : vector<8x64xf32> to vector<8xf32>
    %11 = vector.shape_cast %10 : vector<8xf32> to vector<8x1xf32>
    %cst_8 = arith.constant 1.562500e-02 : f32
    %12 = vector.broadcast %cst_8 : f32 to vector<8x1xf32>
    %13 = arith.mulf %11, %12 : vector<8x1xf32>
    %14 = vector.broadcast %13 : vector<8x1xf32> to vector<8x64xf32>
    %15 = arith.subf %9, %14 : vector<8x64xf32>
    %16 = arith.mulf %15, %15 : vector<8x64xf32>
    %cst_9 = arith.constant dense<0.000000e+00> : vector<8xf32>
    %17 = vector.multi_reduction <add>, %16, %cst_9 [1] : vector<8x64xf32> to vector<8xf32>
    %18 = vector.shape_cast %17 : vector<8xf32> to vector<8x1xf32>
    %cst_10 = arith.constant 1.562500e-02 : f32
    %19 = vector.broadcast %cst_10 : f32 to vector<8x1xf32>
    %20 = arith.mulf %18, %19 : vector<8x1xf32>
    %cst_11 = arith.constant 9.99999974E-6 : f32
    %21 = vector.broadcast %cst_11 : f32 to vector<8x1xf32>
    %22 = arith.addf %20, %21 : vector<8x1xf32>
    %23 = math.rsqrt %22 : vector<8x1xf32>
    %24 = arith.mulf %2, %23 : vector<8x1xf32>
    %25 = vector.broadcast %24 : vector<8x1xf32> to vector<8x64xf32>
    %26 = arith.mulf %15, %25 : vector<8x64xf32>
    %27 = vector.broadcast %3 : vector<8x1xf32> to vector<8x64xf32>
    %28 = arith.addf %26, %27 : vector<8x64xf32>
    %cst_12 = arith.constant 0.000000e+00 : f32
    %29 = vector.broadcast %cst_12 : f32 to vector<8x64xf32>
    %30 = arith.cmpf ogt, %28, %29 : vector<8x64xf32>
    %cst_13 = arith.constant 2.000000e-01 : f32
    %31 = vector.broadcast %cst_13 : f32 to vector<8x64xf32>
    %32 = arith.mulf %31, %28 : vector<8x64xf32>
    %33 = arith.select %30, %28, %32 : vector<8x64xi1>, vector<8x64xf32>
    %34 = vector.extract_strided_slice %33 {offsets = [0, 0], sizes = [4, 64], strides = [1, 1]} : vector<8x64xf32> to vector<4x64xf32>
    %35 = vector.extract_strided_slice %33 {offsets = [4, 0], sizes = [4, 64], strides = [1, 1]} : vector<8x64xf32> to vector<4x64xf32>
    %36 = arith.index_cast %c0_i32 : i32 to index
    %c0_14 = arith.constant 0 : index
    %c0_15 = arith.constant 0 : index
    %37 = vector.load %arg6[%36, %c0_14, %c0_15] : memref<1x4x64xf32, #tpu.memory_space<vmem>>, vector<1x4x64xf32>
    %38 = vector.shape_cast %37 : vector<1x4x64xf32> to vector<4x64xf32>
    %39 = vector.shape_cast %34 : vector<4x64xf32> to vector<1x4x64xf32>
    tpu.vector_store %arg6[%36, %c0_14, %c0_15], %39 {strides = array<i32>} : memref<1x4x64xf32, #tpu.memory_space<vmem>>, vector<1x4x64xf32>,
    %40 = arith.index_cast %c0_i32 : i32 to index
    %c0_16 = arith.constant 0 : index
    %c0_17 = arith.constant 0 : index
    %41 = vector.load %arg7[%40, %c0_16, %c0_17] : memref<1x4x64xf32, #tpu.memory_space<vmem>>, vector<1x4x64xf32>
    %42 = vector.shape_cast %41 : vector<1x4x64xf32> to vector<4x64xf32>
    %43 = vector.shape_cast %35 : vector<4x64xf32> to vector<1x4x64xf32>
    tpu.vector_store %arg7[%40, %c0_16, %c0_17], %43 {strides = array<i32>} : memref<1x4x64xf32, #tpu.memory_space<vmem>>, vector<1x4x64xf32>,
    %44 = arith.index_cast %c0_i32 : i32 to index
    %c0_18 = arith.constant 0 : index
    %c0_19 = arith.constant 0 : index
    %45 = vector.load %arg4[%44, %c0_18, %c0_19] : memref<1x4x64xf32, #tpu.memory_space<vmem>>, vector<1x4x64xf32>
    %46 = vector.shape_cast %45 : vector<1x4x64xf32> to vector<4x64xf32>
    %47 = arith.mulf %35, %46 : vector<4x64xf32>
    %48 = arith.addf %34, %47 : vector<4x64xf32>
    %49 = arith.index_cast %c0_i32 : i32 to index
    %c0_20 = arith.constant 0 : index
    %c0_21 = arith.constant 0 : index
    %50 = vector.load %arg5[%49, %c0_20, %c0_21] : memref<1x4x64xf32, #tpu.memory_space<vmem>>, vector<1x4x64xf32>
    %51 = vector.shape_cast %50 : vector<1x4x64xf32> to vector<4x64xf32>
    %52 = vector.shape_cast %48 : vector<4x64xf32> to vector<1x4x64xf32>
    tpu.vector_store %arg5[%49, %c0_20, %c0_21], %52 {strides = array<i32>} : memref<1x4x64xf32, #tpu.memory_space<vmem>>, vector<1x4x64xf32>,
    %c1_i32 = arith.constant 1 : i32
    return
  }
  func.func @transform_0(%arg0: i32) -> (i32, i32, i32) {
    %c0_i32 = arith.constant 0 : i32
    %c0_i32_0 = arith.constant 0 : i32
    %c0_i32_1 = arith.constant 0 : i32
    return %arg0, %c0_i32, %c0_i32_0 : i32, i32, i32
  }
  func.func @transform_1(%arg0: i32) -> (i32, i32) {
    %c0_i32 = arith.constant 0 : i32
    %c0_i32_0 = arith.constant 0 : i32
    %c0_i32_1 = arith.constant 0 : i32
    return %c0_i32, %c0_i32_0 : i32, i32
  }
  func.func @transform_2(%arg0: i32) -> (i32, i32) {
    %c0_i32 = arith.constant 0 : i32
    %c0_i32_0 = arith.constant 0 : i32
    %c0_i32_1 = arith.constant 0 : i32
    return %c0_i32, %c0_i32_0 : i32, i32
  }
  func.func @transform_3(%arg0: i32) -> (i32, i32, i32) {
    %c0_i32 = arith.constant 0 : i32
    %c0_i32_0 = arith.constant 0 : i32
    %c0_i32_1 = arith.constant 0 : i32
    return %arg0, %c0_i32, %c0_i32_0 : i32, i32, i32
  }
  func.func @transform_4(%arg0: i32) -> (i32, i32, i32) {
    %c0_i32 = arith.constant 0 : i32
    %c0_i32_0 = arith.constant 0 : i32
    %c0_i32_1 = arith.constant 0 : i32
    return %arg0, %c0_i32, %c0_i32_0 : i32, i32, i32
  }
  func.func @transform_5(%arg0: i32) -> (i32, i32, i32) {
    %c0_i32 = arith.constant 0 : i32
    %c0_i32_0 = arith.constant 0 : i32
    %c0_i32_1 = arith.constant 0 : i32
    return %arg0, %c0_i32, %c0_i32_0 : i32, i32, i32
  }
  func.func @transform_6(%arg0: i32) -> (i32, i32, i32) {
    %c0_i32 = arith.constant 0 : i32
    %c0_i32_0 = arith.constant 0 : i32
    %c0_i32_1 = arith.constant 0 : i32
    return %arg0, %c0_i32, %c0_i32_0 : i32, i32, i32
  }
}

</mosaic_0001>

<llo_original>
// kernel: tpu_custom_call.1
$region0: #{tpu_custom_call.1}
  #allocation0 [shape = 'u32[]', space=smem, size = 0x4, offset = 0x4, fixed_abs, tag = 'smem constant byte address 0x4 - core index']
  #allocation1 [shape = 'u32[144,128]{1,0:T(1,128)}', space=vmem, size = 0x12000, scoped, tag = 'internal scratch']
  %s0 = inlined_call_operand.hbm [shape: f32[2,16,64], index: 0, kind: input, shape index: {}]
  %s1 = inlined_call_operand.vmem [shape: f32[8,16], index: 1, kind: input, shape index: {}]
  %s2 = inlined_call_operand.vmem [shape: f32[8,3], index: 2, kind: input, shape index: {}]
  %s3 = inlined_call_operand.vmem [shape: f32[2,4,64], index: 3, kind: input, shape index: {}]
  %s4 = inlined_call_operand.hbm [shape: f32[2,4,64], index: 4, kind: output, shape index: {0}]
  %s5 = inlined_call_operand.hbm [shape: f32[2,4,64], index: 5, kind: output, shape index: {1}]
  %s6 = inlined_call_operand.hbm [shape: f32[2,4,64], index: 6, kind: output, shape index: {2}]
  %7 = xla_tuple %s4, %s5, %s6
  %s8 = sld [smem:[#allocation0]]
  $region69: #{tpu_custom_call.1} parent=0
    _
  %s10 = ssub.s32 1, %s8
  %s11 = scalar_select 0, %s10, %s8
  $region1: #{tpu_custom_call.1} parent=0
    #allocation2 [shape = 'u8[16384]{0}', space=vmem, size = 0x4000, scoped, tag = 'input window, operand 0']
    #allocation3 [shape = 's32[2]{0}', space=sflag, size = 0x8, scoped, tag = 'scoped memory for tpu_custom_call.1']
    #allocation4 [shape = 's32[2]{0}', space=sflag, size = 0x8, scoped, tag = 'scoped memory for tpu_custom_call.1']
    #allocation5 [shape = 'u8[4096]{0}', space=vmem, size = 0x1000, scoped, tag = 'output window, operand 0']
    #allocation6 [shape = 'u8[4096]{0}', space=vmem, size = 0x1000, scoped, tag = 'output window, operand 1']
    #allocation7 [shape = 's32[2]{0}', space=sflag, size = 0x8, scoped, tag = 'scoped memory for tpu_custom_call.1']
    #allocation8 [shape = 'u8[4096]{0}', space=vmem, size = 0x1000, scoped, tag = 'output window, operand 2']
    %12 = vsyncpa [#allocation3], 0
    %s13 = scalar_lea.sflag [#allocation3], 1
    %14 = vsyncpa %s13, 0
    %15 = vsyncpa [#allocation4], 0
    %s16 = scalar_lea.sflag [#allocation4], 1
    %17 = vsyncpa %s16, 0
    %18 = vsyncpa [#allocation7], 0
    %s19 = scalar_lea.sflag [#allocation7], 1
    %20 = vsyncpa %s19, 0
    loop: start=0, step=1, limit=4
    $region2: #{tpu_custom_call.1} parent=1 // loop_pre_header
      _
    $region3: #{tpu_custom_call.1} parent=1 // loop_header
      %s22 = sphi 0, %s26
      %p23 = scmp.ge.s32.totalorder %s22, 4
      %s32 = sphi 0, %s34
      %s35 = sphi 0, %s32
      %s36 = sphi 0, %s35
      %s52 = sphi 0, %s36
      %s56 = sphi 0, %s56
      %s58 = sphi 0, %s56
      %s59 = sphi 0, %s58
      %s73 = sphi 0, %s59
      %s77 = sphi 0, %s77
      %s79 = sphi 0, %s77
      %s80 = sphi 0, %s79
      %s94 = sphi 0, %s80
      %s100 = sphi 0, %s102
      %s103 = sphi 0, %s100
      %s104 = sphi 0, %s103
      %s120 = sphi 0, %s104
      %s126 = sphi 0, %s128
      %s129 = sphi 0, %s126
      %s130 = sphi 0, %s129
      %s146 = sphi 0, %s130
      %s152 = sphi 0, %s154
      %s155 = sphi 0, %s152
      %s156 = sphi 0, %s155
      %s172 = sphi 0, %s156
      %s178 = sphi 0, %s180
      %s181 = sphi 0, %s178
      %s182 = sphi 0, %s181
      %s198 = sphi 0, %s182
    $region4: #{tpu_custom_call.1} parent=1 // loop_header_branch
      %25 = sbr.rel (%p23) target = $region8
    $region5: #{tpu_custom_call.1} parent=1 // loop_body
      %s27 = ssub.s32 %s22, 1
      %s28 = ssub.s32 %s22, 2
      %s29 = sadd.s32 %s22, 1
      %s30 = ssub.s32 %s22, %s29
      %p31 = scmp.eq.s32.totalorder %s30, 0
      %s33 = sadd.s32 %s32, 1
      %s34 = scalar_select %p31, %s32, %s33
      %p37 = pneg %p31
      %p38 = scmp.eq.s32.totalorder %s22, 1
      %p39 = por %p37, %p38
      %p40 = scmp.ne.s32.totalorder %s32, %s35
      %p41 = scmp.eq.s32.totalorder %s22, 0
      %p42 = por %p40, %p41
      %p43 = scmp.ne.s32.totalorder %s32, %s35
      %p44 = scmp.eq.s32.totalorder %s27, 1
      %p45 = por %p43, %p44
      %p46 = scmp.ne.s32.totalorder %s35, %s36
      %p47 = scmp.eq.s32.totalorder %s27, 0
      %p48 = por %p46, %p47
      %p49 = scmp.ne.s32.totalorder %s35, %s36
      %p50 = scmp.eq.s32.totalorder %s28, 1
      %p51 = por %p49, %p50
      %p53 = scmp.ne.s32.totalorder %s36, %s52
      %p54 = scmp.eq.s32.totalorder %s28, 0
      %p55 = por %p53, %p54
      %s57 = sadd.s32 %s56, 1
      %p60 = scmp.eq.s32.totalorder %s22, 1
      %p61 = scmp.ne.s32.totalorder %s56, %s58
      %p62 = scmp.eq.s32.totalorder %s22, 0
      %p63 = por %p61, %p62
      %p64 = scmp.ne.s32.totalorder %s56, %s58
      %p65 = scmp.eq.s32.totalorder %s27, 1
      %p66 = por %p64, %p65
      %p67 = scmp.ne.s32.totalorder %s58, %s59
      %p68 = scmp.eq.s32.totalorder %s27, 0
      %p69 = por %p67, %p68
      %p70 = scmp.ne.s32.totalorder %s58, %s59
      %p71 = scmp.eq.s32.totalorder %s28, 1
      %p72 = por %p70, %p71
      %p74 = scmp.ne.s32.totalorder %s59, %s73
      %p75 = scmp.eq.s32.totalorder %s28, 0
      %p76 = por %p74, %p75
      %s78 = sadd.s32 %s77, 1
      %p81 = scmp.eq.s32.totalorder %s22, 1
      %p82 = scmp.ne.s32.totalorder %s77, %s79
      %p83 = scmp.eq.s32.totalorder %s22, 0
      %p84 = por %p82, %p83
      %p85 = scmp.ne.s32.totalorder %s77, %s79
      %p86 = scmp.eq.s32.totalorder %s27, 1
      %p87 = por %p85, %p86
      %p88 = scmp.ne.s32.totalorder %s79, %s80
      %p89 = scmp.eq.s32.totalorder %s27, 0
      %p90 = por %p88, %p89
      %p91 = scmp.ne.s32.totalorder %s79, %s80
      %p92 = scmp.eq.s32.totalorder %s28, 1
      %p93 = por %p91, %p92
      %p95 = scmp.ne.s32.totalorder %s80, %s94
      %p96 = scmp.eq.s32.totalorder %s28, 0
      %p97 = por %p95, %p96
      %s98 = ssub.s32 %s22, %s29
      %p99 = scmp.eq.s32.totalorder %s98, 0
      %s101 = sadd.s32 %s100, 1
      %s102 = scalar_select %p99, %s100, %s101
      %p105 = pneg %p99
      %p106 = scmp.eq.s32.totalorder %s22, 1
      %p107 = por %p105, %p106
      %p108 = scmp.ne.s32.totalorder %s100, %s103
      %p109 = scmp.eq.s32.totalorder %s22, 0
      %p110 = por %p108, %p109
      %p111 = scmp.ne.s32.totalorder %s100, %s103
      %p112 = scmp.eq.s32.totalorder %s27, 1
      %p113 = por %p111, %p112
      %p114 = scmp.ne.s32.totalorder %s103, %s104
      %p115 = scmp.eq.s32.totalorder %s27, 0
      %p116 = por %p114, %p115
      %p117 = scmp.ne.s32.totalorder %s103, %s104
      %p118 = scmp.eq.s32.totalorder %s28, 1
      %p119 = por %p117, %p118
      %p121 = scmp.ne.s32.totalorder %s104, %s120
      %p122 = scmp.eq.s32.totalorder %s28, 0
      %p123 = por %p121, %p122
      %s124 = ssub.s32 %s22, %s29
      %p125 = scmp.eq.s32.totalorder %s124, 0
      %s127 = sadd.s32 %s126, 1
      %s128 = scalar_select %p125, %s126, %s127
      %p131 = pneg %p125
      %p132 = scmp.eq.s32.totalorder %s22, 1
      %p133 = por %p131, %p132
      %p134 = scmp.ne.s32.totalorder %s126, %s129
      %p135 = scmp.eq.s32.totalorder %s22, 0
      %p136 = por %p134, %p135
      %p137 = scmp.ne.s32.totalorder %s126, %s129
      %p138 = scmp.eq.s32.totalorder %s27, 1
      %p139 = por %p137, %p138
      %p140 = scmp.ne.s32.totalorder %s129, %s130
      %p141 = scmp.eq.s32.totalorder %s27, 0
      %p142 = por %p140, %p141
      %p143 = scmp.ne.s32.totalorder %s129, %s130
      %p144 = scmp.eq.s32.totalorder %s28, 1
      %p145 = por %p143, %p144
      %p147 = scmp.ne.s32.totalorder %s130, %s146
      %p148 = scmp.eq.s32.totalorder %s28, 0
      %p149 = por %p147, %p148
      %s150 = ssub.s32 %s22, %s29
      %p151 = scmp.eq.s32.totalorder %s150, 0
      %s153 = sadd.s32 %s152, 1
      %s154 = scalar_select %p151, %s152, %s153
      %p157 = pneg %p151
      %p158 = scmp.eq.s32.totalorder %s22, 1
      %p159 = por %p157, %p158
      %p160 = scmp.ne.s32.totalorder %s152, %s155
      %p161 = scmp.eq.s32.totalorder %s22, 0
      %p162 = por %p160, %p161
      %p163 = scmp.ne.s32.totalorder %s152, %s155
      %p164 = scmp.eq.s32.totalorder %s27, 1
      %p165 = por %p163, %p164
      %p166 = scmp.ne.s32.totalorder %s155, %s156
      %p167 = scmp.eq.s32.totalorder %s27, 0
      %p168 = por %p166, %p167
      %p169 = scmp.ne.s32.totalorder %s155, %s156
      %p170 = scmp.eq.s32.totalorder %s28, 1
      %p171 = por %p169, %p170
      %p173 = scmp.ne.s32.totalorder %s156, %s172
      %p174 = scmp.eq.s32.totalorder %s28, 0
      %p175 = por %p173, %p174
      %s176 = ssub.s32 %s22, %s29
      %p177 = scmp.eq.s32.totalorder %s176, 0
      %s179 = sadd.s32 %s178, 1
      %s180 = scalar_select %p177, %s178, %s179
      %p183 = pneg %p177
      %p184 = scmp.eq.s32.totalorder %s22, 1
      %p185 = por %p183, %p184
      %p186 = scmp.ne.s32.totalorder %s178, %s181
      %p187 = scmp.eq.s32.totalorder %s22, 0
      %p188 = por %p186, %p187
      %p189 = scmp.ne.s32.totalorder %s178, %s181
      %p190 = scmp.eq.s32.totalorder %s27, 1
      %p191 = por %p189, %p190
      %p192 = scmp.ne.s32.totalorder %s181, %s182
      %p193 = scmp.eq.s32.totalorder %s27, 0
      %p194 = por %p192, %p193
      %p195 = scmp.ne.s32.totalorder %s181, %s182
      %p196 = scmp.eq.s32.totalorder %s28, 1
      %p197 = por %p195, %p196
      %p199 = scmp.ne.s32.totalorder %s182, %s198
      %p200 = scmp.eq.s32.totalorder %s28, 0
      %p201 = por %p199, %p200
      %p202 = scmp.le.s32.totalorder 1, %s22
      %p203 = scmp.lt.s32.totalorder %s22, 3
      %p204 = pnand %p202, %p203
      %p205 = pneg %p204
      // Predicated region
      $region9: #{tpu_custom_call.1} parent=5 // pred_check
        _
      $region10: #{tpu_custom_call.1} parent=5 // pred_check_branch
        %207 = sbr.rel (%p204) target = $region12
      $region11: #{tpu_custom_call.1} parent=5 // pred_region
        %s208 = ssub.s32 %s22, 1
        // Predicated region
        $region13: #{tpu_custom_call.1} parent=11 // pred_check
          %p209 = pneg %p69
        $region14: #{tpu_custom_call.1} parent=11 // pred_check_branch
          %211 = sbr.rel (%p209) target = $region16
        $region15: #{tpu_custom_call.1} parent=11 // pred_region
          _
        $region16: #{tpu_custom_call.1} parent=11 // pred_fallthru
          _
        // Predicated region
        $region17: #{tpu_custom_call.1} parent=11 // pred_check
          %p212 = pneg %p90
        $region18: #{tpu_custom_call.1} parent=11 // pred_check_branch
          %214 = sbr.rel (%p212) target = $region20
        $region19: #{tpu_custom_call.1} parent=11 // pred_region
          _
        $region20: #{tpu_custom_call.1} parent=11 // pred_fallthru
          _
      $region12: #{tpu_custom_call.1} parent=5 // pred_fallthru
        _
      %p215 = scmp.lt.s32.totalorder %s22, 2
      // Predicated region
      $region21: #{tpu_custom_call.1} parent=5 // pred_check
        %p216 = pneg %p215
      $region22: #{tpu_custom_call.1} parent=5 // pred_check_branch
        %218 = sbr.rel (%p216) target = $region24
      $region23: #{tpu_custom_call.1} parent=5 // pred_region
        // Predicated region
        $region25: #{tpu_custom_call.1} parent=23 // pred_check
          %p219 = pneg %p42
        $region26: #{tpu_custom_call.1} parent=23 // pred_check_branch
          %221 = sbr.rel (%p219) target = $region28
        $region27: #{tpu_custom_call.1} parent=23 // pred_region
          %s222 = sand.u32 %s32, 1
          %s223 = scalar_lea.sflag [#allocation3], %s222
          %s224 = sand.u32 %s32, 1
          %s225 = smul.addr %s224, 16
          %s226 = scalar_lea.vmem [#allocation2], %s225
          %s228 = ssub.s32 256, 256
          %229 = vsyncadd %s223, %s228
          %s230 = smul.addr %s22, 2
          %s231 = smul.addr %s230, 128
          %s232 = scalar_lea.hbm %s0, %s231
          %s233 = sshll.u32 %s226, 4
          %s234 = int_to_ptr.vmem [resolvable:$true] %s233
          %239 = dma.hbm_to_vmem [thread:$0]  %s232, 256, %s234, %s223, 128, 128, 8
        $region28: #{tpu_custom_call.1} parent=23 // pred_fallthru
          _
        // Predicated region
        $region29: #{tpu_custom_call.1} parent=23 // pred_check
          %p240 = pneg %p110
        $region30: #{tpu_custom_call.1} parent=23 // pred_check_branch
          %242 = sbr.rel (%p240) target = $region32
        $region31: #{tpu_custom_call.1} parent=23 // pred_region
          %p243 = scmp.lt.s32.totalorder %s22, 1
          %s244 = scalar_select %p243, %s22, 1
          %s245 = smul.addr %s244, 4
          %s246 = scalar_lea.vmem %s3, %s245
        $region32: #{tpu_custom_call.1} parent=23 // pred_fallthru
          _
      $region24: #{tpu_custom_call.1} parent=5 // pred_fallthru
        _
      %p247 = scmp.le.s32.totalorder 1, %s22
      %p248 = scmp.lt.s32.totalorder %s22, 3
      %p249 = pnand %p247, %p248
      %p250 = pneg %p249
      // Predicated region
      $region33: #{tpu_custom_call.1} parent=5 // pred_check
        _
      $region34: #{tpu_custom_call.1} parent=5 // pred_check_branch
        %252 = sbr.rel (%p249) target = $region36
      $region35: #{tpu_custom_call.1} parent=5 // pred_region
        %s253 = ssub.s32 %s22, 1
        %s254 = sand.u32 %s35, 1
        %s255 = scalar_lea.sflag [#allocation3], %s254
        %s256 = sand.u32 %s35, 1
        %s257 = smul.addr %s256, 16
        %s258 = scalar_lea.vmem [#allocation2], %s257
        // Predicated region
        $region37: #{tpu_custom_call.1} parent=35 // pred_check
          %p259 = pneg %p48
        $region38: #{tpu_custom_call.1} parent=35 // pred_check_branch
          %261 = sbr.rel (%p259) target = $region40
        $region39: #{tpu_custom_call.1} parent=35 // pred_region
          %262 = dma.done %s255, 256
        $region40: #{tpu_custom_call.1} parent=35 // pred_fallthru
          _
        %s263 = sand.u32 %s35, 1
        %s264 = scalar_lea.sflag [#allocation3], %s263
        %s265 = sand.u32 %s35, 1
        %s266 = smul.addr %s265, 16
        %s267 = scalar_lea.vmem [#allocation2], %s266
        %p268 = pneg %p48
        %p269 = pneg %p45
        %p270 = pneg %p69
        %p271 = pneg %p66
        %p272 = pneg %p90
        %p273 = pneg %p87
        %p274 = scmp.lt.s32.totalorder %s27, 1
        %s275 = scalar_select %p274, %s27, 1
        %s276 = smul.addr %s275, 4
        %s277 = scalar_lea.vmem %s3, %s276
        %p278 = pneg %p116
        %p279 = pneg %p113
        %p280 = pneg %p142
        %p281 = pneg %p139
        %s282 = sand.u32 %s129, 1
        %s283 = scalar_lea.sflag [#allocation4], %s282
        %s284 = sand.u32 %s129, 1
        %s285 = smul.addr %s284, 4
        %s286 = scalar_lea.vmem [#allocation5], %s285
        %p287 = pneg %p168
        %p288 = pneg %p165
        %s289 = sand.u32 %s27, 1
        %s290 = scalar_lea.sflag [#allocation7], %s289
        %s291 = sand.u32 %s155, 1
        %s292 = smul.addr %s291, 4
        %s293 = scalar_lea.vmem [#allocation6], %s292
        %p294 = pneg %p194
        %p295 = pneg %p191
        %s296 = sand.u32 %s27, 1
        %s297 = scalar_lea.sflag [#allocation7], %s296
        %s298 = sand.u32 %s181, 1
        %s299 = smul.addr %s298, 4
        %s300 = scalar_lea.vmem [#allocation8], %s299
        %p301 = scmp.lt.s32.totalorder %s27, 1
        %s302 = scalar_select %p301, %s27, 1
        %s303 = smul.addr %s302, 4
        %s304 = scalar_lea.vmem %s3, %s303
        %v305 = vld [vmem:[%s1] sm:$0xff]
        %v306 = vld [vmem:[%s2] sm:$0xff]
        %v307 = vld [vmem:[%s258] sm:$0xff]
        %v308 = vld [vmem:[%s258 + $0x8] sm:$0xff]
        %310 = vset.pattern.permute.xlu0 0
        %311 = vperm.xlu0 %310, %v306
        %v312 = vpop.permute.xlu0 %311
        %vm314 = vcmask 130048
        %v316 = vsel %vm314, %v305, 0
        %318 = vmatprep.subr.mxu0 0.0
        %319 = vmatpush1.msra.mxu0 %v307
        %320 = vmatprep.subr.mxu0 0.0
        %321 = vmatpush1.msra.mxu0 %v308
        %322 = vmatprep.subr.mxu0 0.0
        %323 = vmatpush1.msra.mxu0 0.0
        %324 = vmatprep.subr.mxu0 0.0
        %325 = vmatpush1.msra.mxu0 0.0
        %326 = vmatprep.subr.mxu0 0.0
        %327 = vmatpush1.msra.mxu0 0.0
        %328 = vmatprep.subr.mxu0 0.0
        %329 = vmatpush1.msra.mxu0 0.0
        %330 = vmatprep.subr.mxu0 0.0
        %331 = vmatpush1.msra.mxu0 0.0
        %332 = vmatprep.subr.mxu0 0.0
        %333 = vmatpush1.msra.mxu0 0.0
        %334 = vmatprep.subr.mxu0 0.0
        %335 = vmatpush1.msra.mxu0 0.0
        %336 = vmatprep.subr.mxu0 0.0
        %337 = vmatpush1.msra.mxu0 0.0
        %338 = vmatprep.subr.mxu0 0.0
        %339 = vmatpush1.msra.mxu0 0.0
        %340 = vmatprep.subr.mxu0 0.0
        %341 = vmatpush1.msra.mxu0 0.0
        %342 = vmatprep.subr.mxu0 0.0
        %343 = vmatpush1.msra.mxu0 0.0
        %344 = vmatprep.subr.mxu0 0.0
        %345 = vmatpush1.msra.mxu0 0.0
        %346 = vmatprep.subr.mxu0 0.0
        %347 = vmatpush1.msra.mxu0 0.0
        %348 = vmatprep.subr.mxu0 0.0
        %349 = vmatpush1.msra.mxu0 0.0
        %350 = vmatprep.subr.mxu0 0.0
        %351 = vmatpush1.msra.mxu0 0.0
        %352 = vmatprep.subr.mxu0 0.0
        %353 = vmatpush1.msra.mxu0 0.0
        %354 = vmatprep.subr.mxu0 0.0
        %355 = vmatpush1.msra.mxu0 0.0
        %356 = vmatprep.subr.mxu0 0.0
        %357 = vmatpush1.msra.mxu0 0.0
        %358 = vmatprep.subr.mxu0 0.0
        %359 = vmatpush1.msra.mxu0 0.0
        %360 = vmatprep.subr.mxu0 0.0
        %361 = vmatpush1.msra.mxu0 0.0
        %362 = vmatprep.subr.mxu0 0.0
        %363 = vmatpush1.msra.mxu0 0.0
        %364 = vmatprep.subr.mxu0 0.0
        %365 = vmatpush1.msra.mxu0 0.0
        %366 = vmatprep.subr.mxu0 0.0
        %367 = vmatpush1.msra.mxu0 0.0
        %368 = vmatprep.subr.mxu0 0.0
        %369 = vmatpush1.msra.mxu0 0.0
        %370 = vmatprep.subr.mxu0 0.0
        %371 = vmatpush1.msra.mxu0 0.0
        %372 = vmatprep.subr.mxu0 0.0
        %373 = vmatpush1.msra.mxu0 0.0
        %374 = vmatprep.subr.mxu0 0.0
        %375 = vmatpush1.msra.mxu0 0.0
        %376 = vmatprep.subr.mxu0 0.0
        %377 = vmatpush1.msra.mxu0 0.0
        %378 = vmatprep.subr.mxu0 0.0
        %379 = vmatpush1.msra.mxu0 0.0
        %380 = vmatprep.subr.mxu0 0.0
        %381 = vmatpush1.msra.mxu0 0.0
        %382 = vmatprep.mubr.f32.mxu0 0.0
        %383 = vmatmul.mubr.f32.gmra.mrb[0].mxu0 %v316
        %v384 = vpop.f32.mrb[0].mxu0
        %v385 = vadd.f32 %v312, %v384
        %v386 = vpop.f32.mrb[0].mxu0
        %387 = vdwg.mxu0
        %vm388 = vcmask 523264
        %v389 = vsel %vm388, %v385, 0.0
        %390 = vadd.xlane.f32.xlu0 %v389
        %v391 = vpop.xlane.xlu0 %390
        %v392 = vmul.f32 %v391, 0.015625
        %v393 = vsub.f32 %v385, %v392
        %v394 = vmul.f32 %v393, %v393
        %v395 = vsel %vm388, %v394, 0.0
        %396 = vadd.xlane.f32.xlu0 %v395
        %v397 = vpop.xlane.xlu0 %396
        %v398 = vmul.f32 %v397, 0.015625
        %v399 = vadd.f32 %v398, 1e-05
        %v400 = vrsqrt.pop %v399
        %v401 = vmul.f32 %v306, %v400
        %403 = vset.pattern.permute.xlu0 1
        %404 = vperm.xlu0 %403, %v401
        %v405 = vpop.permute.xlu0 %404
        %v407 = vmul.f32 %v393, %v405
        %408 = vset.pattern.permute.xlu0 2
        %409 = vperm.xlu0 %408, %v306
        %v410 = vpop.permute.xlu0 %409
        %v412 = vadd.f32 %v407, %v410
        %vm413 = vcmp.gt.f32.partialorder %v412, 0.0
        %v414 = vmul.f32 %v412, 0.2
        %v415 = vsel %vm413, %v412, %v414
        %vm416 = vcmask 519168
        %417 = vst.msk [vmem:[%s293] sm:$0xf] %vm416, %v415
        %vm418 = vcmask 523268
        %419 = vst.msk [vmem:[%s300 - $0x4] sm:$0xf0] %vm418, %v415
        %v420 = vld [vmem:[%s304] sm:$0xf]
        %v422 = vrot.slane %v420, 4
        %v424 = vmul.f32 %v415, %v422
        %v426 = vrot.slane %v424, 4
        %v428 = vadd.f32 %v415, %v426
        %429 = vst.msk [vmem:[%s286] sm:$0xf] %vm416, %v428
        %s430 = sand.u32 %s129, 1
        %s431 = scalar_lea.sflag [#allocation4], %s430
        %s432 = sand.u32 %s129, 1
        %s433 = smul.addr %s432, 4
        %s434 = scalar_lea.vmem [#allocation5], %s433
        %s435 = sand.u32 %s27, 1
        %s436 = scalar_lea.sflag [#allocation7], %s435
        %s437 = sand.u32 %s155, 1
        %s438 = smul.addr %s437, 4
        %s439 = scalar_lea.vmem [#allocation6], %s438
        %s440 = sand.u32 %s27, 1
        %s441 = scalar_lea.sflag [#allocation7], %s440
        %s442 = sand.u32 %s181, 1
        %s443 = smul.addr %s442, 4
        %s444 = scalar_lea.vmem [#allocation8], %s443
        // Predicated region
        $region41: #{tpu_custom_call.1} parent=35 // pred_check
          %p445 = pneg %p139
        $region42: #{tpu_custom_call.1} parent=35 // pred_check_branch
          %447 = sbr.rel (%p445) target = $region44
        $region43: #{tpu_custom_call.1} parent=35 // pred_region
          %s449 = ssub.s32 64, 64
          %450 = vsyncadd %s431, %s449
          %s451 = smul.addr %s27, 64
          %s452 = scalar_lea.hbm %s4, %s451
          %s454 = sshll.u32 %s434, 4
          %s455 = int_to_ptr.vmem [resolvable:$true] %s454
          %457 = dma.vmem_to_hbm [thread:$0]  %s455, 64, %s452, %s431
        $region44: #{tpu_custom_call.1} parent=35 // pred_fallthru
          _
        // Predicated region
        $region45: #{tpu_custom_call.1} parent=35 // pred_check
          %p458 = pneg %p165
        $region46: #{tpu_custom_call.1} parent=35 // pred_check_branch
          %460 = sbr.rel (%p458) target = $region48
        $region47: #{tpu_custom_call.1} parent=35 // pred_region
          %s462 = ssub.s32 64, 64
          %463 = vsyncadd %s436, %s462
          %s464 = smul.addr %s27, 64
          %s465 = scalar_lea.hbm %s5, %s464
          %s467 = sshll.u32 %s439, 4
          %s468 = int_to_ptr.vmem [resolvable:$true] %s467
          %470 = dma.vmem_to_hbm [thread:$0]  %s468, 64, %s465, %s436
        $region48: #{tpu_custom_call.1} parent=35 // pred_fallthru
          _
        // Predicated region
        $region49: #{tpu_custom_call.1} parent=35 // pred_check
          %p471 = pneg %p191
        $region50: #{tpu_custom_call.1} parent=35 // pred_check_branch
          %473 = sbr.rel (%p471) target = $region52
        $region51: #{tpu_custom_call.1} parent=35 // pred_region
          %s475 = ssub.s32 64, 64
          %476 = vsyncadd %s441, %s475
          %s477 = smul.addr %s27, 64
          %s478 = scalar_lea.hbm %s6, %s477
          %s480 = sshll.u32 %s444, 4
          %s481 = int_to_ptr.vmem [resolvable:$true] %s480
          %483 = dma.vmem_to_hbm [thread:$0]  %s481, 64, %s478, %s441
        $region52: #{tpu_custom_call.1} parent=35 // pred_fallthru
          _
      $region36: #{tpu_custom_call.1} parent=5 // pred_fallthru
        _
      %p484 = scmp.le.s32.totalorder 2, %s22
      // Predicated region
      $region53: #{tpu_custom_call.1} parent=5 // pred_check
        %p485 = pneg %p484
      $region54: #{tpu_custom_call.1} parent=5 // pred_check_branch
        %487 = sbr.rel (%p485) target = $region56
      $region55: #{tpu_custom_call.1} parent=5 // pred_region
        %s488 = ssub.s32 %s22, 2
        // Predicated region
        $region57: #{tpu_custom_call.1} parent=55 // pred_check
          %p489 = pneg %p145
        $region58: #{tpu_custom_call.1} parent=55 // pred_check_branch
          %491 = sbr.rel (%p489) target = $region60
        $region59: #{tpu_custom_call.1} parent=55 // pred_region
          %s492 = sand.u32 %s130, 1
          %s493 = scalar_lea.sflag [#allocation4], %s492
          %s494 = sand.u32 %s130, 1
          %s495 = smul.addr %s494, 4
          %s496 = scalar_lea.vmem [#allocation5], %s495
          %497 = dma.done %s493, 64
        $region60: #{tpu_custom_call.1} parent=55 // pred_fallthru
          _
        // Predicated region
        $region61: #{tpu_custom_call.1} parent=55 // pred_check
          %p498 = pneg %p171
        $region62: #{tpu_custom_call.1} parent=55 // pred_check_branch
          %500 = sbr.rel (%p498) target = $region64
        $region63: #{tpu_custom_call.1} parent=55 // pred_region
          %s501 = sand.u32 %s28, 1
          %s502 = scalar_lea.sflag [#allocation7], %s501
          %s503 = sand.u32 %s156, 1
          %s504 = smul.addr %s503, 4
          %s505 = scalar_lea.vmem [#allocation6], %s504
          %506 = dma.done %s502, 64
        $region64: #{tpu_custom_call.1} parent=55 // pred_fallthru
          _
        // Predicated region
        $region65: #{tpu_custom_call.1} parent=55 // pred_check
          %p507 = pneg %p197
        $region66: #{tpu_custom_call.1} parent=55 // pred_check_branch
          %509 = sbr.rel (%p507) target = $region68
        $region67: #{tpu_custom_call.1} parent=55 // pred_region
          %s510 = sand.u32 %s28, 1
          %s511 = scalar_lea.sflag [#allocation7], %s510
          %s512 = sand.u32 %s182, 1
          %s513 = smul.addr %s512, 4
          %s514 = scalar_lea.vmem [#allocation8], %s513
          %515 = dma.done %s511, 64
        $region68: #{tpu_custom_call.1} parent=55 // pred_fallthru
          _
      $region56: #{tpu_custom_call.1} parent=5 // pred_fallthru
        _
    $region6: #{tpu_custom_call.1} parent=1 // loop_footer
      %s26 = sadd.s32 1, %s22
    $region7: #{tpu_custom_call.1} parent=1 // loop_footer_branch
      %21 = sbr.rel target = $region3
    $region8: #{tpu_custom_call.1} parent=1 // loop_exit
      _
    %516 = vsyncpa [#allocation3], 1
    %s517 = scalar_lea.sflag [#allocation3], 1
    %518 = vsyncpa %s517, 1
    %519 = vsyncpa [#allocation4], 1
    %s520 = scalar_lea.sflag [#allocation4], 1
    %521 = vsyncpa %s520, 1
    %522 = vsyncpa [#allocation7], 1
    %s523 = scalar_lea.sflag [#allocation7], 1
    %524 = vsyncpa %s523, 1

</llo_original>
